<compile_context>
chip_gen: v7x
topology: tpu7x:2x2x1
jax: 0.10.0
libtpu: 0.0.40
codegen_flags: <defaults>
</compile_context>

<pallas_src>
import jax
import jax.numpy as jnp
from jax.experimental import pallas as pl
from jax.experimental.pallas import tpu as pltpu


def value_net_kernel(x_ref, w1_ref, b1_ref, w2_ref, b2_ref, w3_ref, b3_ref, o_ref):
    # layer 1: h1 = relu(x @ W1 + b1)   (bf16 operands, f32 accumulation)
    x = x_ref[...].astype(jnp.bfloat16)
    h1 = jnp.dot(x, w1_ref[...], preferred_element_type=jnp.float32)
    h1 = jnp.maximum(h1 + b1_ref[...], 0.0)

    # layer 2: h2 = relu(h1 @ W2 + b2)
    h2 = jnp.dot(h1.astype(jnp.bfloat16), w2_ref[...],
                 preferred_element_type=jnp.float32)
    h2 = jnp.maximum(h2 + b2_ref[...], 0.0)

    # layer 3 (N=1): keep it off the MXU -- VPU multiply + lane reduce.
    # w3_ref is the weight column pre-transposed to a (1, hidden) row.
    v = jnp.sum(h2 * w3_ref[...], axis=-1)            # (tb,) -- lanes

    # b3 is a scalar living in SMEM; store lane-dense as a (1, tb) row.
    o_ref[...] = (v + b3_ref[0]).reshape(1, -1).astype(o_ref.dtype)


def _round_up(x, m):
    return (x + m - 1) // m * m


# Conservative per-call working-set budget / scoped-VMEM limit. 32 MiB working
# set + 48 MiB limit is safe on v7x (64 MiB physical), v6e (128 MiB), and lifts
# v5e above its 16 MiB default scoped limit.
_VMEM_WORKING_BUDGET = 32 << 20
_VMEM_LIMIT_BYTES = 48 << 20


def value_net_forward(state, params, *, block_b=1024):
    """state: (B, state_dim) float32 -> (B, 1) float32."""
    w1, b1, w2, b2, w3, b3 = params
    B, state_dim = state.shape
    hidden = w1.shape[1]

    def working_set_bytes(t):
        weights = (state_dim * hidden + hidden * hidden) * 2     # resident bf16 (single buffer)
        consts = 3 * hidden * 4                                  # b1, b2, w3 row (f32)
        stream = 2 * t * state_dim * 4 + 2 * t * 4               # double-buffered x + out
        inter = 2 * t * hidden * 4 + 2 * t * hidden * 2          # f32 h1/h2 + bf16 casts
        return weights + consts + stream + inter

    # Batch tile: multiple of 8 (sublane), capped by block_b and by B.
    tb = min(_round_up(max(block_b, 8), 8), _round_up(max(B, 1), 8))
    # v7x has two TensorCores: keep the "parallel" batch grid >= 2 steps when
    # the batch is big enough for a split to be worthwhile.
    if B >= 256:
        tb = min(tb, _round_up((B + 1) // 2, 8))
    # Shrink only if the f32 intermediates + weights would blow the VMEM budget
    # (relevant for hidden in the thousands, esp. on v7x's 64 MiB VMEM).
    while tb > 8 and working_set_bytes(tb) > _VMEM_WORKING_BUDGET:
        tb = max(8, _round_up(tb // 2, 8))

    b_pad = _round_up(B, tb)
    if b_pad != B:
        state = jnp.pad(state, ((0, b_pad - B), (0, 0)))
    n_tiles = b_pad // tb

    # Cast matmul weights to bf16 once; final-layer column and biases stay f32.
    w1b = w1.astype(jnp.bfloat16)
    w2b = w2.astype(jnp.bfloat16)
    w3_row = w3.reshape(1, hidden)          # (hidden, 1) -> (1, hidden)
    b3_s = b3.reshape(1)                    # scalar bias for SMEM

    # Constant operands: block index never changes -> single pipeline buffer.
    resident = dict(pipeline_mode=pl.Buffered(1))

    flops = 2 * b_pad * (state_dim * hidden + hidden * hidden + hidden)
    bytes_accessed = (
        b_pad * state_dim * 4 + b_pad * 4                      # input + output (f32 in HBM)
        + (state_dim * hidden + hidden * hidden) * 2           # bf16 weights
        + (3 * hidden + 1) * 4                                 # biases + w3 row
    )

    out = pl.pallas_call(
        value_net_kernel,
        out_shape=jax.ShapeDtypeStruct((n_tiles, tb), jnp.float32),
        grid=(n_tiles,),
        in_specs=[
            pl.BlockSpec((tb, state_dim), lambda i: (i, 0)),                # x tile
            pl.BlockSpec((state_dim, hidden), lambda i: (0, 0), **resident),  # W1
            pl.BlockSpec((1, hidden), lambda i: (0, 0), **resident),          # b1
            pl.BlockSpec((hidden, hidden), lambda i: (0, 0), **resident),     # W2
            pl.BlockSpec((1, hidden), lambda i: (0, 0), **resident),          # b2
            pl.BlockSpec((1, hidden), lambda i: (0, 0), **resident),          # w3 row
            pl.BlockSpec(memory_space=pltpu.MemorySpace.SMEM),               # b3 scalar
        ],
        out_specs=pl.BlockSpec((1, tb), lambda i: (i, 0)),                   # lane-dense row
        compiler_params=pltpu.CompilerParams(
            dimension_semantics=("parallel",),                               # megacore on v7x
            vmem_limit_bytes=_VMEM_LIMIT_BYTES),
        cost_estimate=pl.CostEstimate(
            flops=flops, transcendentals=0, bytes_accessed=bytes_accessed),
    )(state, w1b, b1, w2b, b2, w3_row, b3_s)

    # (n_tiles, tb) lane-dense slab back to (B, 1).
    return out.reshape(b_pad, 1)[:B]


def xavier_uniform(key, fan_in, fan_out, dtype=jnp.float32):
    # matches torch.nn.init.xavier_uniform_ (gain=1); stored (in, out)
    limit = jnp.sqrt(6.0 / (fan_in + fan_out))
    return jax.random.uniform(key, (fan_in, fan_out), dtype, -limit, limit)


def init_value_net(key, state_dim, hidden_dim):
    k1, k2, k3 = jax.random.split(key, 3)
    w1 = xavier_uniform(k1, state_dim, hidden_dim)
    b1 = jnp.zeros((1, hidden_dim), jnp.float32)
    w2 = xavier_uniform(k2, hidden_dim, hidden_dim)
    b2 = jnp.zeros((1, hidden_dim), jnp.float32)
    w3 = xavier_uniform(k3, hidden_dim, 1)
    b3 = jnp.zeros((1,), jnp.float32)
    return (w1, b1, w2, b2, w3, b3)


def value_net_ref(state, params):
    """Pure-JAX reference doing the same bf16-operand / f32-accumulation math."""
    w1, b1, w2, b2, w3, b3 = params
    h1 = jnp.dot(state.astype(jnp.bfloat16), w1.astype(jnp.bfloat16),
                 preferred_element_type=jnp.float32)
    h1 = jnp.maximum(h1 + b1, 0.0)
    h2 = jnp.dot(h1.astype(jnp.bfloat16), w2.astype(jnp.bfloat16),
                 preferred_element_type=jnp.float32)
    h2 = jnp.maximum(h2 + b2, 0.0)
    return h2 @ w3 + b3[0]


if __name__ == "__main__":
    key = jax.random.PRNGKey(0)
    k_param, k_state, k_state2 = jax.random.split(key, 3)

    batch, state_dim, hidden_dim = 2, 16, 32
    params = init_value_net(k_param, state_dim, hidden_dim)

    # small single-tile case
    state = jax.random.normal(k_state, (batch, state_dim), jnp.float32)
    out = jax.block_until_ready(value_net_forward(state, params))
    ref = value_net_ref(state, params)
    assert out.shape == (batch, 1), out.shape
    assert jnp.allclose(out, ref, atol=2e-3, rtol=2e-3), (out, ref)

    # multi-tile case exercising the batch grid, padding path, and the
    # >=2-grid-step cap (B >= 256).
    batch2 = 300
    state2 = jax.random.normal(k_state2, (batch2, state_dim), jnp.float32)
    out2 = jax.block_until_ready(value_net_forward(state2, params, block_b=128))
    ref2 = value_net_ref(state2, params)
    assert out2.shape == (batch2, 1), out2.shape
    assert jnp.allclose(out2, ref2, atol=2e-3, rtol=2e-3)

    print("KERNEL_OK")
</pallas_src>

<mosaic_0001>
module attributes {stable_mosaic.version = 11 : i64} {
  func.func @value_net_kernel(%arg0: i32, %arg1: memref<8x16xf32, #tpu.memory_space<vmem>>, %arg2: memref<16x32xbf16, #tpu.memory_space<vmem>>, %arg3: memref<1x32xf32, #tpu.memory_space<vmem>>, %arg4: memref<32x32xbf16, #tpu.memory_space<vmem>>, %arg5: memref<1x32xf32, #tpu.memory_space<vmem>>, %arg6: memref<1x32xf32, #tpu.memory_space<vmem>>, %arg7: memref<1xf32, #tpu.memory_space<smem>>, %arg8: memref<1x8xf32, #tpu.memory_space<vmem>>) attributes {dimension_semantics = [#tpu.dimension_semantics<parallel>], iteration_bounds = array<i64: 1>, scalar_prefetch = 0 : i64, scratch_operands = 0 : i64, tpu.core_type = #tpu.core_type<tc>, window_params = [{transform_indices = @transform_0, window_bounds = array<i64: 8, 16>}, {pipeline_mode = #tpu.pipeline_mode<synchronous>, transform_indices = @transform_1, window_bounds = array<i64: 16, 32>}, {pipeline_mode = #tpu.pipeline_mode<synchronous>, transform_indices = @transform_2, window_bounds = array<i64: 1, 32>}, {pipeline_mode = #tpu.pipeline_mode<synchronous>, transform_indices = @transform_3, window_bounds = array<i64: 32, 32>}, {pipeline_mode = #tpu.pipeline_mode<synchronous>, transform_indices = @transform_4, window_bounds = array<i64: 1, 32>}, {pipeline_mode = #tpu.pipeline_mode<synchronous>, transform_indices = @transform_5, window_bounds = array<i64: 1, 32>}, {transform_indices = @transform_6, window_bounds = array<i64: 1>}, {transform_indices = @transform_7, window_bounds = array<i64: 1, 8>}]} {
    %c0 = arith.constant 0 : index
    %c0_0 = arith.constant 0 : index
    %0 = vector.load %arg1[%c0, %c0_0] : memref<8x16xf32, #tpu.memory_space<vmem>>, vector<8x16xf32>
    %1 = arith.truncf %0 : vector<8x16xf32> to vector<8x16xbf16>
    %c0_1 = arith.constant 0 : index
    %c0_2 = arith.constant 0 : index
    %2 = vector.load %arg2[%c0_1, %c0_2] : memref<16x32xbf16, #tpu.memory_space<vmem>>, vector<16x32xbf16>
    %cst = arith.constant dense<0.000000e+00> : vector<8x32xf32>
    %3 = tpu.matmul %1, %2, %cst {dimension_numbers = #tpu.dot_dimension_numbers<[1], [0], [0], [1], [0, 0, 1, 1], [], []>} : vector<8x16xbf16>, vector<16x32xbf16>, vector<8x32xf32> -> vector<8x32xf32>
    %c0_3 = arith.constant 0 : index
    %c0_4 = arith.constant 0 : index
    %4 = vector.load %arg3[%c0_3, %c0_4] : memref<1x32xf32, #tpu.memory_space<vmem>>, vector<1x32xf32>
    %5 = vector.broadcast %4 : vector<1x32xf32> to vector<8x32xf32>
    %6 = arith.addf %3, %5 : vector<8x32xf32>
    %cst_5 = arith.constant 0.000000e+00 : f32
    %7 = vector.broadcast %cst_5 : f32 to vector<8x32xf32>
    %8 = arith.maximumf %6, %7 : vector<8x32xf32>
    %9 = arith.truncf %8 : vector<8x32xf32> to vector<8x32xbf16>
    %c0_6 = arith.constant 0 : index
    %c0_7 = arith.constant 0 : index
    %10 = vector.load %arg4[%c0_6, %c0_7] : memref<32x32xbf16, #tpu.memory_space<vmem>>, vector<32x32xbf16>
    %cst_8 = arith.constant dense<0.000000e+00> : vector<8x32xf32>
    %11 = tpu.matmul %9, %10, %cst_8 {dimension_numbers = #tpu.dot_dimension_numbers<[1], [0], [0], [1], [0, 0, 1, 1], [], []>} : vector<8x32xbf16>, vector<32x32xbf16>, vector<8x32xf32> -> vector<8x32xf32>
    %c0_9 = arith.constant 0 : index
    %c0_10 = arith.constant 0 : index
    %12 = vector.load %arg5[%c0_9, %c0_10] : memref<1x32xf32, #tpu.memory_space<vmem>>, vector<1x32xf32>
    %13 = vector.broadcast %12 : vector<1x32xf32> to vector<8x32xf32>
    %14 = arith.addf %11, %13 : vector<8x32xf32>
    %cst_11 = arith.constant 0.000000e+00 : f32
    %15 = vector.broadcast %cst_11 : f32 to vector<8x32xf32>
    %16 = arith.maximumf %14, %15 : vector<8x32xf32>
    %c0_12 = arith.constant 0 : index
    %c0_13 = arith.constant 0 : index
    %17 = vector.load %arg6[%c0_12, %c0_13] : memref<1x32xf32, #tpu.memory_space<vmem>>, vector<1x32xf32>
    %18 = vector.broadcast %17 : vector<1x32xf32> to vector<8x32xf32>
    %19 = arith.mulf %16, %18 : vector<8x32xf32>
    %cst_14 = arith.constant dense<0.000000e+00> : vector<8xf32>
    %20 = vector.multi_reduction <add>, %19, %cst_14 [1] : vector<8x32xf32> to vector<8xf32>
    %c0_15 = arith.constant 0 : index
    %21 = memref.load %arg7[%c0_15] : memref<1xf32, #tpu.memory_space<smem>>
    %22 = vector.broadcast %21 : f32 to vector<8xf32>
    %23 = arith.addf %20, %22 : vector<8xf32>
    %24 = vector.shape_cast %23 : vector<8xf32> to vector<1x8xf32>
    %c0_16 = arith.constant 0 : index
    %c0_17 = arith.constant 0 : index
    %25 = vector.load %arg8[%c0_16, %c0_17] : memref<1x8xf32, #tpu.memory_space<vmem>>, vector<1x8xf32>
    tpu.vector_store %arg8[%c0_16, %c0_17], %24 {strides = array<i32>} : memref<1x8xf32, #tpu.memory_space<vmem>>, vector<1x8xf32>,
    return
  }
  func.func @transform_0(%arg0: i32) -> (i32, i32) {
    %c0_i32 = arith.constant 0 : i32
    %c0_i32_0 = arith.constant 0 : i32
    return %arg0, %c0_i32 : i32, i32
  }
  func.func @transform_1(%arg0: i32) -> (i32, i32) {
    %c0_i32 = arith.constant 0 : i32
    %c0_i32_0 = arith.constant 0 : i32
    %c0_i32_1 = arith.constant 0 : i32
    return %c0_i32, %c0_i32_0 : i32, i32
  }
  func.func @transform_2(%arg0: i32) -> (i32, i32) {
    %c0_i32 = arith.constant 0 : i32
    %c0_i32_0 = arith.constant 0 : i32
    %c0_i32_1 = arith.constant 0 : i32
    return %c0_i32, %c0_i32_0 : i32, i32
  }
  func.func @transform_3(%arg0: i32) -> (i32, i32) {
    %c0_i32 = arith.constant 0 : i32
    %c0_i32_0 = arith.constant 0 : i32
    %c0_i32_1 = arith.constant 0 : i32
    return %c0_i32, %c0_i32_0 : i32, i32
  }
  func.func @transform_4(%arg0: i32) -> (i32, i32) {
    %c0_i32 = arith.constant 0 : i32
    %c0_i32_0 = arith.constant 0 : i32
    %c0_i32_1 = arith.constant 0 : i32
    return %c0_i32, %c0_i32_0 : i32, i32
  }
  func.func @transform_5(%arg0: i32) -> (i32, i32) {
    %c0_i32 = arith.constant 0 : i32
    %c0_i32_0 = arith.constant 0 : i32
    %c0_i32_1 = arith.constant 0 : i32
    return %c0_i32, %c0_i32_0 : i32, i32
  }
  func.func @transform_6(%arg0: i32) -> i32 {
    %c0_i32 = arith.constant 0 : i32
    %c0_i32_0 = arith.constant 0 : i32
    return %c0_i32 : i32
  }
  func.func @transform_7(%arg0: i32) -> (i32, i32) {
    %c0_i32 = arith.constant 0 : i32
    %c0_i32_0 = arith.constant 0 : i32
    return %arg0, %c0_i32 : i32, i32
  }
}

</mosaic_0001>

<llo_original>
// kernel: tpu_custom_call.1
$region0: #{tpu_custom_call.1}
  #allocation0 [shape = 'u32[]', space=smem, size = 0x4, offset = 0x4, fixed_abs, tag = 'smem constant byte address 0x4 - core index']
  #allocation1 [shape = 'u32[144,128]{1,0:T(1,128)}', space=vmem, size = 0x12000, scoped, tag = 'internal scratch']
  #allocation2 [shape = 'f32[1]{0:T(128)S(6)}', space=smem, size = 0x200, scoped, tag = 'scoped memory for tpu_custom_call.1']
  %s0 = inlined_call_operand.hbm [shape: f32[8,16], index: 0, kind: input, shape index: {}]
  %s1 = inlined_call_operand.hbm [shape: bf16[16,32], index: 1, kind: input, shape index: {}]
  %s2 = inlined_call_operand.vmem [shape: f32[1,32], index: 2, kind: input, shape index: {}]
  %s3 = inlined_call_operand.hbm [shape: bf16[32,32], index: 3, kind: input, shape index: {}]
  %s4 = inlined_call_operand.vmem [shape: f32[1,32], index: 4, kind: input, shape index: {}]
  %s5 = inlined_call_operand.vmem [shape: f32[1,32], index: 5, kind: input, shape index: {}]
  %s6 = inlined_call_operand.<no memory space> [shape: f32[1], index: 6, kind: input, shape index: {}]
  %s7 = inlined_call_operand.hbm [shape: f32[1,8], index: 7, kind: output, shape index: {}]
  %s8 = sld [smem:[#allocation0]]
  $region50: #{tpu_custom_call.1} parent=0
    _
  %s10 = ssub.s32 1, %s8
  %s11 = scalar_select 0, %s10, %s8
  %12 = sst [smem:[#allocation2]] %s6
  $region1: #{tpu_custom_call.1} parent=0
    #allocation3 [shape = 'u8[4096]{0}', space=vmem, size = 0x1000, scoped, tag = 'input window, operand 0, single buffered']
    #allocation4 [shape = 's32[1]{0}', space=sflag, size = 0x4, scoped, tag = 'scoped memory for tpu_custom_call.1']
    #allocation5 [shape = 's32[1]{0}', space=sflag, size = 0x4, scoped, tag = 'scoped memory for tpu_custom_call.1']
    #allocation6 [shape = 'u8[4096]{0}', space=vmem, size = 0x1000, scoped, tag = 'input window, operand 1, single buffered']
    #allocation7 [shape = 's32[1]{0}', space=sflag, size = 0x4, scoped, tag = 'scoped memory for tpu_custom_call.1']
    #allocation8 [shape = 'u8[8192]{0}', space=vmem, size = 0x2000, scoped, tag = 'input window, operand 3, single buffered']
    #allocation9 [shape = 'u8[512]{0}', space=vmem, size = 0x400, scoped, tag = 'output window, operand 0, single buffered']
    %13 = vsyncpa [#allocation4], 0
    %14 = vsyncpa [#allocation7], 0
    %15 = vsyncpa [#allocation5], 0
    // Predicated region
    $region2: #{tpu_custom_call.1} parent=1 // pred_check
      _
    $region3: #{tpu_custom_call.1} parent=1 // pred_check_branch
      %17 = sbr.rel (0) target = $region5
    $region4: #{tpu_custom_call.1} parent=1 // pred_region
      %s19 = ssub.s32 128, 128
      %20 = vsyncadd [#allocation4], %s19
      %s22 = sshll.u32 [#allocation3], 4
      %s23 = int_to_ptr.vmem [resolvable:$true] %s22
      %25 = dma.hbm_to_vmem [thread:$0]  %s0, 128, %s23, [#allocation4]
    $region5: #{tpu_custom_call.1} parent=1 // pred_fallthru
      _
    // Predicated region
    $region6: #{tpu_custom_call.1} parent=1 // pred_check
      _
    $region7: #{tpu_custom_call.1} parent=1 // pred_check_branch
      %27 = sbr.rel (0) target = $region9
    $region8: #{tpu_custom_call.1} parent=1 // pred_region
      %s29 = ssub.s32 128, 128
      %30 = vsyncadd [#allocation7], %s29
      %s31 = sshll.u32 [#allocation6], 4
      %s32 = int_to_ptr.vmem [resolvable:$true] %s31
      %37 = dma.hbm_to_vmem [thread:$0]  %s1, 128, %s32, [#allocation7], 64, 64, 4
    $region9: #{tpu_custom_call.1} parent=1 // pred_fallthru
      _
    // Predicated region
    $region10: #{tpu_custom_call.1} parent=1 // pred_check
      _
    $region11: #{tpu_custom_call.1} parent=1 // pred_check_branch
      %39 = sbr.rel (0) target = $region13
    $region12: #{tpu_custom_call.1} parent=1 // pred_region
      _
    $region13: #{tpu_custom_call.1} parent=1 // pred_fallthru
      _
    // Predicated region
    $region14: #{tpu_custom_call.1} parent=1 // pred_check
      _
    $region15: #{tpu_custom_call.1} parent=1 // pred_check_branch
      %41 = sbr.rel (0) target = $region17
    $region16: #{tpu_custom_call.1} parent=1 // pred_region
      %s43 = ssub.s32 256, 256
      %44 = vsyncadd [#allocation7], %s43
      %s45 = sshll.u32 [#allocation8], 4
      %s46 = int_to_ptr.vmem [resolvable:$true] %s45
      %51 = dma.hbm_to_vmem [thread:$0]  %s3, 256, %s46, [#allocation7], 64, 64, 4
    $region17: #{tpu_custom_call.1} parent=1 // pred_fallthru
      _
    // Predicated region
    $region18: #{tpu_custom_call.1} parent=1 // pred_check
      _
    $region19: #{tpu_custom_call.1} parent=1 // pred_check_branch
      %53 = sbr.rel (0) target = $region21
    $region20: #{tpu_custom_call.1} parent=1 // pred_region
      _
    $region21: #{tpu_custom_call.1} parent=1 // pred_fallthru
      _
    // Predicated region
    $region22: #{tpu_custom_call.1} parent=1 // pred_check
      _
    $region23: #{tpu_custom_call.1} parent=1 // pred_check_branch
      %55 = sbr.rel (0) target = $region25
    $region24: #{tpu_custom_call.1} parent=1 // pred_region
      _
    $region25: #{tpu_custom_call.1} parent=1 // pred_fallthru
      _
    // Predicated region
    $region26: #{tpu_custom_call.1} parent=1 // pred_check
      _
    $region27: #{tpu_custom_call.1} parent=1 // pred_check_branch
      %57 = sbr.rel (0) target = $region29
    $region28: #{tpu_custom_call.1} parent=1 // pred_region
      _
    $region29: #{tpu_custom_call.1} parent=1 // pred_fallthru
      _
    // Predicated region
    $region30: #{tpu_custom_call.1} parent=1 // pred_check
      _
    $region31: #{tpu_custom_call.1} parent=1 // pred_check_branch
      %59 = sbr.rel (0) target = $region33
    $region32: #{tpu_custom_call.1} parent=1 // pred_region
      %60 = dma.done [#allocation4], 128
    $region33: #{tpu_custom_call.1} parent=1 // pred_fallthru
      _
    // Predicated region
    $region34: #{tpu_custom_call.1} parent=1 // pred_check
      _
    $region35: #{tpu_custom_call.1} parent=1 // pred_check_branch
      %62 = sbr.rel (0) target = $region37
    $region36: #{tpu_custom_call.1} parent=1 // pred_region
      %63 = dma.done [#allocation7], 128
    $region37: #{tpu_custom_call.1} parent=1 // pred_fallthru
      _
    // Predicated region
    $region38: #{tpu_custom_call.1} parent=1 // pred_check
      _
    $region39: #{tpu_custom_call.1} parent=1 // pred_check_branch
      %65 = sbr.rel (0) target = $region41
    $region40: #{tpu_custom_call.1} parent=1 // pred_region
      %66 = dma.done [#allocation7], 256
    $region41: #{tpu_custom_call.1} parent=1 // pred_fallthru
      _
    %v68 = vld [vmem:[#allocation3] sm:$0xff]
    %v69 = vpack.c.bf16 %v68, %v68
    %v70 = vld [vmem:[#allocation6] sm:$0xf]
    %v71 = vld [vmem:[#allocation6 + $0x4] sm:$0xf]
    %v72 = vld [vmem:[%s2] sm:$0x1]
    %v74 = vlaneseq
    %v75 = vshrl.u32 %v74, 7
    %v76 = vsub.s32 0, %v75
    %v77 = vrot.slane %v72, %v76
    %v81 = vunpack.c.l.b16 %v70
    %v82 = vunpack.c.l.b16 %v71
    %v83 = vpack.c.b16 %v82, %v81
    %vm85 = vcmask 130048
    %v87 = vsel %vm85, %v69, 0
    %89 = vmatprep.subr.bf16.mxu0 0
    %90 = vmatpush1.bf16.msra.mxu0 %v83
    %91 = vmatprep.subr.bf16.mxu0 0
    %92 = vmatpush1.bf16.msra.mxu0 0
    %93 = vmatprep.subr.bf16.mxu0 0
    %94 = vmatpush1.bf16.msra.mxu0 0
    %95 = vmatprep.subr.bf16.mxu0 0
    %96 = vmatpush1.bf16.msra.mxu0 0
    %97 = vmatprep.subr.bf16.mxu0 0
    %98 = vmatpush1.bf16.msra.mxu0 0
    %99 = vmatprep.subr.bf16.mxu0 0
    %100 = vmatpush1.bf16.msra.mxu0 0
    %101 = vmatprep.subr.bf16.mxu0 0
    %102 = vmatpush1.bf16.msra.mxu0 0
    %103 = vmatprep.subr.bf16.mxu0 0
    %104 = vmatpush1.bf16.msra.mxu0 0
    %105 = vmatprep.subr.bf16.mxu0 0
    %106 = vmatpush1.bf16.msra.mxu0 0
    %107 = vmatprep.subr.bf16.mxu0 0
    %108 = vmatpush1.bf16.msra.mxu0 0
    %109 = vmatprep.subr.bf16.mxu0 0
    %110 = vmatpush1.bf16.msra.mxu0 0
    %111 = vmatprep.subr.bf16.mxu0 0
    %112 = vmatpush1.bf16.msra.mxu0 0
    %113 = vmatprep.subr.bf16.mxu0 0
    %114 = vmatpush1.bf16.msra.mxu0 0
    %115 = vmatprep.subr.bf16.mxu0 0
    %116 = vmatpush1.bf16.msra.mxu0 0
    %117 = vmatprep.subr.bf16.mxu0 0
    %118 = vmatpush1.bf16.msra.mxu0 0
    %119 = vmatprep.subr.bf16.mxu0 0
    %120 = vmatpush1.bf16.msra.mxu0 0
    %121 = vmatprep.mubr.bf16.mxu0 0
    %122 = vmatmul.mubr.bf16.gmra.mrb[0].mxu0 %v87
    %v123 = vpop.f32.mrb[0].mxu0
    %v124 = vadd.f32 %v77, %v123
    %v125 = vpop.f32.mrb[0].mxu0
    %v126 = vpop.f32.mrb[0].mxu0
    %v127 = vpop.f32.mrb[0].mxu0
    %128 = vdwg.mxu0
    %v129 = vmax.f32 %v124, 0.0
    %v130 = vpack.c.bf16 %v129, %v129
    %v131 = vld [vmem:[#allocation8] sm:$0xf]
    %v132 = vld [vmem:[#allocation8 + $0x4] sm:$0xf]
    %v133 = vld [vmem:[#allocation8 + $0x8] sm:$0xf]
    %v134 = vld [vmem:[#allocation8 + $0xc] sm:$0xf]
    %v135 = vld [vmem:[%s4] sm:$0x1]
    %v137 = vlaneseq
    %v138 = vshrl.u32 %v137, 7
    %v139 = vsub.s32 0, %v138
    %v140 = vrot.slane %v135, %v139
    %v146 = vunpack.c.l.b16 %v131
    %v147 = vunpack.c.l.b16 %v132
    %v148 = vunpack.c.l.b16 %v133
    %v149 = vunpack.c.l.b16 %v134
    %v150 = vpack.c.b16 %v147, %v146
    %v151 = vpack.c.b16 %v149, %v148
    %vm154 = vcmask 261120
    %v156 = vsel %vm154, %v130, 0
    %158 = vmatprep.subr.bf16.mxu0 0
    %159 = vmatpush1.bf16.msra.mxu0 %v150
    %160 = vmatprep.subr.bf16.mxu0 0
    %161 = vmatpush1.bf16.msra.mxu0 %v151
    %162 = vmatprep.subr.bf16.mxu0 0
    %163 = vmatpush1.bf16.msra.mxu0 0
    %164 = vmatprep.subr.bf16.mxu0 0
    %165 = vmatpush1.bf16.msra.mxu0 0
    %166 = vmatprep.subr.bf16.mxu0 0
    %167 = vmatpush1.bf16.msra.mxu0 0
    %168 = vmatprep.subr.bf16.mxu0 0
    %169 = vmatpush1.bf16.msra.mxu0 0
    %170 = vmatprep.subr.bf16.mxu0 0
    %171 = vmatpush1.bf16.msra.mxu0 0
    %172 = vmatprep.subr.bf16.mxu0 0
    %173 = vmatpush1.bf16.msra.mxu0 0
    %174 = vmatprep.subr.bf16.mxu0 0
    %175 = vmatpush1.bf16.msra.mxu0 0
    %176 = vmatprep.subr.bf16.mxu0 0
    %177 = vmatpush1.bf16.msra.mxu0 0
    %178 = vmatprep.subr.bf16.mxu0 0
    %179 = vmatpush1.bf16.msra.mxu0 0
    %180 = vmatprep.subr.bf16.mxu0 0
    %181 = vmatpush1.bf16.msra.mxu0 0
    %182 = vmatprep.subr.bf16.mxu0 0
    %183 = vmatpush1.bf16.msra.mxu0 0
    %184 = vmatprep.subr.bf16.mxu0 0
    %185 = vmatpush1.bf16.msra.mxu0 0
    %186 = vmatprep.subr.bf16.mxu0 0
    %187 = vmatpush1.bf16.msra.mxu0 0
    %188 = vmatprep.subr.bf16.mxu0 0
    %189 = vmatpush1.bf16.msra.mxu0 0
    %190 = vmatprep.mubr.bf16.mxu0 0
    %191 = vmatmul.mubr.bf16.gmra.mrb[0].mxu0 %v156
    %v192 = vpop.f32.mrb[0].mxu0
    %v193 = vadd.f32 %v140, %v192
    %v194 = vpop.f32.mrb[0].mxu0
    %v195 = vpop.f32.mrb[0].mxu0
    %v196 = vpop.f32.mrb[0].mxu0
    %197 = vdwg.mxu0
    %v198 = vmax.f32 %v193, 0.0
    %v199 = vld [vmem:[%s5] sm:$0x1]
    %v201 = vlaneseq
    %v202 = vshrl.u32 %v201, 7
    %v203 = vsub.s32 0, %v202
    %v204 = vrot.slane %v199, %v203
    %v206 = vmul.f32 %v198, %v204
    %v207 = vsel %vm154, %v206, 0.0
    %208 = vadd.xlane.f32.xlu0 %v207
    %v209 = vpop.xlane.xlu0 %208
    %s210 = sld [smem:[#allocation2]]
    %v211 = vstv %s210
    %v212 = vadd.f32 %v209, %v211
    %v214 = vlaneseq
    %v215 = vand.u32 %v214, 127
    %v216 = vlaneseq
    %v217 = vshrl.u32 %v216, 7
    %v218 = vsub.s32 %v215, %v217
    %v219 = vrot.slane %v212, %v218
    %vm221 = vcmask 57344
    %222 = vst.msk [vmem:[#allocation9] sm:$0x1] %vm221, %v219
    // Predicated region
    $region42: #{tpu_custom_call.1} parent=1 // pred_check
      _
    $region43: #{tpu_custom_call.1} parent=1 // pred_check_branch
      %224 = sbr.rel (0) target = $region45
    $region44: #{tpu_custom_call.1} parent=1 // pred_region
      %s226 = ssub.s32 16, 16
      %227 = vsyncadd [#allocation5], %s226
      %s229 = sshll.u32 [#allocation9], 4
      %s230 = int_to_ptr.vmem [resolvable:$true] %s229
      %232 = dma.vmem_to_hbm [thread:$0]  %s230, 16, %s7, [#allocation5]
    $region45: #{tpu_custom_call.1} parent=1 // pred_fallthru
      _
    // Predicated region
    $region46: #{tpu_custom_call.1} parent=1 // pred_check
      _
    $region47: #{tpu_custom_call.1} parent=1 // pred_check_branch
      %234 = sbr.rel (0) target = $region49
    $region48: #{tpu_custom_call.1} parent=1 // pred_region
      %235 = dma.done [#allocation5], 16
    $region49: #{tpu_custom_call.1} parent=1 // pred_fallthru
      _
    %236 = vsyncpa [#allocation4], 1
    %237 = vsyncpa [#allocation7], 1
    %238 = vsyncpa [#allocation5], 1

</llo_original>
